<compile_context>
chip_gen: v6e
topology: v6e:2x2x1
jax: 0.10.0
libtpu: 0.0.40
codegen_flags: <defaults>
</compile_context>

<pallas_src>
import functools
import math

import jax
import jax.numpy as jnp
from jax import lax
from jax.experimental import pallas as pl
from jax.experimental.pallas import tpu as pltpu

LAYERS = 4
CHANNELS = 64
VIEW_DIM = 7
NEURAL_OUT_PAD = 128           # lane-dense padded output channels (2 real)
SAMPLING_RATE = 48000.0
SPEED_OF_SOUND = 343.0


def _cdiv(a, b):
    return -(-a // b)


# ----------------------------------------------------------------------------
# Kernel 1: neural warpfield (causal conv1d k=2 stack + 1x1 conv), channels-last.
# Row-tiled over B*K frames; the previous row-tile is loaded as a halo and
# recomputed so the causal shift (pltpu.roll + batch-start mask) stays local.
# ----------------------------------------------------------------------------
def _neural_warpfield_kernel(xp_ref, xc_ref, mp_ref, mc_ref, w_ref, b_ref,
                             wlin_ref, blin_ref, out_ref, *, row_tile):
    # (2R, C): previous row-tile (halo, recomputed) stacked over current tile.
    act = jnp.concatenate([xp_ref[...], xc_ref[...]], axis=0)
    mask = jnp.concatenate([mp_ref[...], mc_ref[...]], axis=0)        # (2R, 1)
    for l in range(LAYERS):
        # causal x[t-1]: sublane roll (XLU slot, ~free) + zero at batch starts.
        prev = pltpu.roll(act, 1, 0) * mask
        cat = jnp.concatenate([prev, act], axis=-1)                   # (2R, 2C)
        y = jnp.dot(cat, w_ref[l], preferred_element_type=jnp.float32) + b_ref[l]
        act = jnp.maximum(y, 0.0)                                     # ReLU
    # final 1x1 conv only on the current (second) half of the rows
    out = (jnp.dot(act[row_tile:, :], wlin_ref[...],
                   preferred_element_type=jnp.float32) + blin_ref[...])
    out_ref[...] = out.astype(out_ref.dtype)                  # (R, NEURAL_OUT_PAD)


def neural_warpfield_pallas(view, params, *, row_tile=256):
    """view: (B, 7, K) -> neural warpfield (B, 2, K)."""
    B, V, K = view.shape
    BK = B * K
    row_tile = max(8, min((int(row_tile) // 8) * 8, _cdiv(BK, 8) * 8))
    assert row_tile > LAYERS            # halo recompute absorbs causal boundary
    BKp = _cdiv(BK, row_tile) * row_tile
    n_tiles = BKp // row_tile

    x = jnp.transpose(view, (0, 2, 1)).reshape(BK, V).astype(jnp.float32)
    x = jnp.pad(x, ((0, BKp - BK), (0, CHANNELS - V)))                # (BKp, C)
    rows = jnp.arange(BKp)
    # mask[i] = 0 at batch starts (left zero-pad of the causal conv) / pad rows
    mask = (((rows % K) != 0) & (rows < BK)).astype(jnp.float32)[:, None]

    # fused per-layer weights: rows 0..C-1 multiply x[t-1], rows C..2C-1 x[t]
    w = jnp.concatenate([params['wp'], params['wc']], axis=1)        # (L, 2C, C)
    b = params['b']                                                   # (L, 1, C)
    wlin = jnp.pad(params['wlin'], ((0, 0), (0, NEURAL_OUT_PAD - 2)))
    blin = jnp.pad(params['blin'], ((0, 0), (0, NEURAL_OUT_PAD - 2)))

    kernel = functools.partial(_neural_warpfield_kernel, row_tile=row_tile)
    out = pl.pallas_call(
        kernel,
        out_shape=jax.ShapeDtypeStruct((BKp, NEURAL_OUT_PAD), jnp.float32),
        grid_spec=pltpu.PrefetchScalarGridSpec(
            num_scalar_prefetch=0,
            grid=(n_tiles,),
            in_specs=[
                pl.BlockSpec((row_tile, CHANNELS),
                             lambda i: (jnp.maximum(i - 1, 0), 0)),   # halo tile
                pl.BlockSpec((row_tile, CHANNELS), lambda i: (i, 0)),  # cur tile
                pl.BlockSpec((row_tile, 1),
                             lambda i: (jnp.maximum(i - 1, 0), 0)),
                pl.BlockSpec((row_tile, 1), lambda i: (i, 0)),
                pl.BlockSpec(w.shape, lambda i: (0, 0, 0)),
                pl.BlockSpec(b.shape, lambda i: (0, 0, 0)),
                pl.BlockSpec(wlin.shape, lambda i: (0, 0)),
                pl.BlockSpec(blin.shape, lambda i: (0, 0)),
            ],
            out_specs=pl.BlockSpec((row_tile, NEURAL_OUT_PAD), lambda i: (i, 0)),
        ),
        compiler_params=pltpu.CompilerParams(
            dimension_semantics=("parallel",)),
    )(x, x, mask, mask, w, b, wlin, blin)
    neu = out[:BK, :2].reshape(B, K, 2)
    return jnp.transpose(neu, (0, 2, 1))                              # (B, 2, K)


# ----------------------------------------------------------------------------
# Kernel 2: banded linear-interpolation gather of the monotone warp.
# One grid step per (ear-row, output tile); the whole source band arrives as
# `band_blocks` signal blocks, interpolation is a single bf16 "tent" matmul.
# ----------------------------------------------------------------------------
def _monotone_gather_kernel(*refs, band_blocks, tile_n):
    iota_ref = refs[0]                            # (band, tile_n) f32, resident
    sig_refs = refs[1:1 + band_blocks]            # band_blocks x (1, 1, tile_n)
    pm_ref = refs[1 + band_blocks]                # (1, 1, tile_n)
    out_ref = refs[2 + band_blocks]               # (1, 1, tile_n)

    j = pl.program_id(1)
    band_start = (jnp.maximum(j + 1 - band_blocks, 0) * tile_n).astype(jnp.float32)
    rel = pm_ref[0] - band_start                          # (1, tile_n) src pos
    band = jnp.concatenate([r[0] for r in sig_refs], axis=-1)  # (1, band)

    # tent weights: (1-alpha) at floor(pm), alpha at floor(pm)+1, 0 elsewhere.
    # Built in f32 on the VPU (v5e has no bf16 VALU); single cast for the MXU.
    tent = jnp.maximum(1.0 - jnp.abs(iota_ref[...] - rel), 0.0)  # (band, tile_n)
    out = jnp.dot(band.astype(jnp.bfloat16), tent.astype(jnp.bfloat16),
                  preferred_element_type=jnp.float32)            # (1, tile_n)
    out_ref[0] = out


def monotone_time_warp_pallas(mono, pm, *, max_delay, max_tile=512):
    """mono: (B, 1, T); pm: (B, 2, T) monotone absolute positions -> (B, 2, T)."""
    B, _, T = mono.shape
    B2 = B * 2
    max_delay = max(0, int(max_delay))
    # Smallest lane-aligned tile >= max_delay keeps the band at 2 tiles; cap it
    # so the per-step tent matrix stays small and grow the band instead.
    tile_n = min(max(128, _cdiv(max_delay, 128) * 128), int(max_tile))
    Tp = _cdiv(T, tile_n) * tile_n
    nj = Tp // tile_n
    band_blocks = max(1, min(1 + _cdiv(max_delay, tile_n), nj))
    band = band_blocks * tile_n

    sig = jnp.pad(mono.astype(jnp.float32), ((0, 0), (0, 0), (0, Tp - T)))
    pm_rows = jnp.pad(pm.reshape(B2, 1, T).astype(jnp.float32),
                      ((0, 0), (0, 0), (0, Tp - T)), mode='edge')
    # source-index iota, loaded once (constant block index -> no re-DMA)
    iota = lax.broadcasted_iota(jnp.float32, (band, tile_n), 0)

    kernel = functools.partial(_monotone_gather_kernel,
                               band_blocks=band_blocks, tile_n=tile_n)
    # both ears read the same mono blocks (no duplicated signal in HBM)
    sig_specs = [
        pl.BlockSpec((1, 1, tile_n),
                     lambda i, j, s=s: (i // 2, 0,
                                        jnp.maximum(j + 1 - band_blocks, 0) + s))
        for s in range(band_blocks)
    ]
    flops = 2 * B2 * nj * band * tile_n
    bytes_accessed = 4 * (B2 * nj * band + 2 * B2 * Tp + band * tile_n)

    out = pl.pallas_call(
        kernel,
        out_shape=jax.ShapeDtypeStruct((B2, 1, Tp), jnp.float32),
        grid_spec=pltpu.PrefetchScalarGridSpec(
            num_scalar_prefetch=0,
            grid=(B2, nj),
            in_specs=([pl.BlockSpec((band, tile_n), lambda i, j: (0, 0))]
                      + sig_specs
                      + [pl.BlockSpec((1, 1, tile_n), lambda i, j: (i, 0, j))]),
            out_specs=pl.BlockSpec((1, 1, tile_n), lambda i, j: (i, 0, j)),
        ),
        compiler_params=pltpu.CompilerParams(
            dimension_semantics=("parallel", "parallel")),
        cost_estimate=pl.CostEstimate(flops=flops, transcendentals=0,
                                      bytes_accessed=bytes_accessed),
    )(iota, *([sig] * band_blocks), pm_rows)
    return out[:, 0, :T].reshape(B, 2, T)


# ----------------------------------------------------------------------------
# Glue: geometric warpfield (quaternion math from GeometricWarper, plain JAX).
# ----------------------------------------------------------------------------
def geometric_warpfield(view, seq_length):
    B, _, K = view.shape
    quat = jnp.transpose(view[:, 3:, :], (0, 2, 1)).reshape(-1, 4)  # [x,y,z,w]
    norms = jnp.sqrt(jnp.sum(quat ** 2, axis=1))
    eps = (norms == 0.0).astype(jnp.float32)
    quat = quat + eps[:, None]                       # matches reference fixup
    quat = quat / jnp.sqrt(jnp.sum(quat ** 2, axis=1, keepdims=True))
    x, y, z, w = quat[:, 0], quat[:, 1], quat[:, 2], quat[:, 3]
    rot = jnp.stack([
        jnp.stack([1 - 2 * (y * y + z * z), 2 * (x * y - z * w),
                   2 * (x * z + y * w)], axis=-1),
        jnp.stack([2 * (x * y + z * w), 1 - 2 * (x * x + z * z),
                   2 * (y * z - x * w)], axis=-1),
        jnp.stack([2 * (x * z - y * w), 2 * (y * z + x * w),
                   1 - 2 * (x * x + y * y)], axis=-1),
    ], axis=1)                                            # (N, 3, 3)
    mouth = jnp.array([0.09, 0.0, -0.2], jnp.float32)
    tm = jnp.einsum('nji,j->ni', rot, mouth)              # inverse rotation
    tm = jnp.transpose(tm.reshape(B, K, 3), (0, 2, 1))    # (B, 3, K)
    left_ear = jnp.array([0.0, -0.08, -0.22], jnp.float32)
    right_ear = jnp.array([0.0, 0.08, -0.22], jnp.float32)
    dl = view[:, 0:3, :] + tm - left_ear[None, :, None]
    dr = view[:, 0:3, :] + tm - right_ear[None, :, None]
    disp = jnp.stack([dl, dr], axis=1)                    # (B, 2, 3, K)
    dist = jnp.sqrt(jnp.sum(disp ** 2, axis=2))           # (B, 2, K)
    dist = jnp.repeat(dist, seq_length // K, axis=-1)     # nearest interpolate
    return -dist / SPEED_OF_SOUND * SAMPLING_RATE


# ----------------------------------------------------------------------------
# Parameters (deterministic synthetic init; shapes match nn.Conv1d layers).
# ----------------------------------------------------------------------------
def init_warpnet_params(key, layers=LAYERS, channels=CHANNELS,
                        view_dim=VIEW_DIM):
    keys = jax.random.split(key, 2 * layers + 2)
    wp, wc, bs = [], [], []
    for l in range(layers):
        cin = view_dim if l == 0 else channels
        # Conv1d weight: (Cout, Cin, 2); tap 0 hits x[t-1], tap 1 hits x[t]
        w = jax.random.normal(keys[2 * l], (channels, cin, 2),
                              jnp.float32) * 0.05
        bias = jax.random.normal(keys[2 * l + 1], (channels,),
                                 jnp.float32) * 0.05
        wp_l = jnp.zeros((channels, channels), jnp.float32)
        wc_l = jnp.zeros((channels, channels), jnp.float32)
        wp_l = wp_l.at[:cin, :].set(w[:, :, 0].T)   # zero rows = padded inputs
        wc_l = wc_l.at[:cin, :].set(w[:, :, 1].T)
        wp.append(wp_l)
        wc.append(wc_l)
        bs.append(bias[None, :])
    wlin = jax.random.normal(keys[-2], (2, channels, 1), jnp.float32) * 0.05
    blin = jax.random.normal(keys[-1], (2,), jnp.float32) * 0.05
    return dict(
        wp=jnp.stack(wp), wc=jnp.stack(wc), b=jnp.stack(bs),
        wlin=wlin[:, :, 0].T, blin=blin[None, :])


# ----------------------------------------------------------------------------
# Warpnet.forward
# ----------------------------------------------------------------------------
def warpnet_forward(params, mono, view, *, max_delay=None):
    B, _, T = mono.shape
    K = view.shape[-1]
    geo = geometric_warpfield(view, T)                           # (B, 2, T)
    neu = neural_warpfield_pallas(view, params)                  # (B, 2, K)
    neu = jnp.repeat(neu, T // K, axis=-1)                       # (B, 2, T)
    wf = jnp.minimum(geo + neu, 0.0)                             # -relu(-wf)
    # O(T) absolute-position + monotonicity math stays outside the kernel.
    # (float indices are exact while T < 2^24, fine for audio lengths)
    t_range = jnp.arange(T, dtype=jnp.float32)
    pos = jnp.clip(wf + t_range, 0.0, float(T - 1))
    pm = lax.cummax(pos, axis=2)                                 # monotone positions
    if max_delay is None:
        # TODO(synk): concretized at trace time (host sync); pass an explicit
        # max_delay bound (e.g. from scene size) when wrapping in jax.jit.
        max_delay = int(math.ceil(float(jnp.max(t_range - pm))))
    max_delay = max(0, int(max_delay))
    # Clamp so every source stays inside the gather band even if the caller's
    # max_delay underestimates the true delay (max of monotone seqs = monotone).
    pm = jnp.maximum(pm, t_range - float(max_delay))
    return monotone_time_warp_pallas(mono, pm, max_delay=max_delay)


if __name__ == "__main__":
    key = jax.random.PRNGKey(0)
    k_mono, k_view, k_params = jax.random.split(key, 3)
    B, T = 2, 800
    K = T // 400                      # docstring: K = T / 400
    mono = jax.random.normal(k_mono, (B, 1, T), jnp.float32)
    view = jax.random.normal(k_view, (B, 7, K), jnp.float32)
    params = init_warpnet_params(k_params)

    out = warpnet_forward(params, mono, view)
    out = jax.block_until_ready(out)
    assert out.shape == (B, 2, T), out.shape
    assert bool(jnp.all(jnp.isfinite(out)))
    print("KERNEL_OK")
</pallas_src>

<mosaic_0001>
module attributes {stable_mosaic.version = 11 : i64} {
  func.func @_neural_warpfield_kernel(%arg0: i32, %arg1: memref<8x64xf32, #tpu.memory_space<vmem>>, %arg2: memref<8x64xf32, #tpu.memory_space<vmem>>, %arg3: memref<8x1xf32, #tpu.memory_space<vmem>>, %arg4: memref<8x1xf32, #tpu.memory_space<vmem>>, %arg5: memref<4x128x64xf32, #tpu.memory_space<vmem>>, %arg6: memref<4x1x64xf32, #tpu.memory_space<vmem>>, %arg7: memref<64x128xf32, #tpu.memory_space<vmem>>, %arg8: memref<1x128xf32, #tpu.memory_space<vmem>>, %arg9: memref<8x128xf32, #tpu.memory_space<vmem>>) attributes {dimension_semantics = [#tpu.dimension_semantics<parallel>], iteration_bounds = array<i64: 1>, scalar_prefetch = 0 : i64, scratch_operands = 0 : i64, tpu.core_type = #tpu.core_type<tc>, window_params = [{transform_indices = @transform_0, window_bounds = array<i64: 8, 64>}, {transform_indices = @transform_1, window_bounds = array<i64: 8, 64>}, {transform_indices = @transform_2, window_bounds = array<i64: 8, 1>}, {transform_indices = @transform_3, window_bounds = array<i64: 8, 1>}, {pipeline_mode = #tpu.pipeline_mode<synchronous>, transform_indices = @transform_4, window_bounds = array<i64: 4, 128, 64>}, {pipeline_mode = #tpu.pipeline_mode<synchronous>, transform_indices = @transform_5, window_bounds = array<i64: 4, 1, 64>}, {pipeline_mode = #tpu.pipeline_mode<synchronous>, transform_indices = @transform_6, window_bounds = array<i64: 64, 128>}, {pipeline_mode = #tpu.pipeline_mode<synchronous>, transform_indices = @transform_7, window_bounds = array<i64: 1, 128>}, {transform_indices = @transform_8, window_bounds = array<i64: 8, 128>}]} {
    %c0 = arith.constant 0 : index
    %c0_0 = arith.constant 0 : index
    %0 = vector.load %arg1[%c0, %c0_0] : memref<8x64xf32, #tpu.memory_space<vmem>>, vector<8x64xf32>
    %c0_1 = arith.constant 0 : index
    %c0_2 = arith.constant 0 : index
    %1 = vector.load %arg2[%c0_1, %c0_2] : memref<8x64xf32, #tpu.memory_space<vmem>>, vector<8x64xf32>
    %2 = tpu.concatenate %0, %1 in 0 : vector<8x64xf32>, vector<8x64xf32> -> vector<16x64xf32>
    %c0_3 = arith.constant 0 : index
    %c0_4 = arith.constant 0 : index
    %3 = vector.load %arg3[%c0_3, %c0_4] : memref<8x1xf32, #tpu.memory_space<vmem>>, vector<8x1xf32>
    %c0_5 = arith.constant 0 : index
    %c0_6 = arith.constant 0 : index
    %4 = vector.load %arg4[%c0_5, %c0_6] : memref<8x1xf32, #tpu.memory_space<vmem>>, vector<8x1xf32>
    %5 = tpu.concatenate %3, %4 in 0 : vector<8x1xf32>, vector<8x1xf32> -> vector<16x1xf32>
    %c1_i32 = arith.constant 1 : i32
    %6 = tpu.dynamic_rotate %2 by %c1_i32 dim 0 : vector<16x64xf32>, i32 -> vector<16x64xf32>
    %7 = vector.broadcast %5 : vector<16x1xf32> to vector<16x64xf32>
    %8 = arith.mulf %6, %7 : vector<16x64xf32>
    %9 = tpu.concatenate %8, %2 in 1 : vector<16x64xf32>, vector<16x64xf32> -> vector<16x128xf32>
    %c0_7 = arith.constant 0 : index
    %c0_8 = arith.constant 0 : index
    %c0_9 = arith.constant 0 : index
    %10 = vector.load %arg5[%c0_7, %c0_8, %c0_9] : memref<4x128x64xf32, #tpu.memory_space<vmem>>, vector<1x128x64xf32>
    %11 = vector.shape_cast %10 : vector<1x128x64xf32> to vector<128x64xf32>
    %cst = arith.constant dense<0.000000e+00> : vector<16x64xf32>
    %12 = tpu.matmul %9, %11, %cst {dimension_numbers = #tpu.dot_dimension_numbers<[1], [0], [0], [1], [0, 0, 1, 1], [], []>} : vector<16x128xf32>, vector<128x64xf32>, vector<16x64xf32> -> vector<16x64xf32>
    %c0_10 = arith.constant 0 : index
    %c0_11 = arith.constant 0 : index
    %c0_12 = arith.constant 0 : index
    %13 = vector.load %arg6[%c0_10, %c0_11, %c0_12] : memref<4x1x64xf32, #tpu.memory_space<vmem>>, vector<1x1x64xf32>
    %14 = vector.shape_cast %13 : vector<1x1x64xf32> to vector<1x64xf32>
    %15 = vector.broadcast %14 : vector<1x64xf32> to vector<16x64xf32>
    %16 = arith.addf %12, %15 : vector<16x64xf32>
    %cst_13 = arith.constant 0.000000e+00 : f32
    %17 = vector.broadcast %cst_13 : f32 to vector<16x64xf32>
    %18 = arith.maximumf %16, %17 : vector<16x64xf32>
    %c1_i32_14 = arith.constant 1 : i32
    %19 = tpu.dynamic_rotate %18 by %c1_i32_14 dim 0 : vector<16x64xf32>, i32 -> vector<16x64xf32>
    %20 = vector.broadcast %5 : vector<16x1xf32> to vector<16x64xf32>
    %21 = arith.mulf %19, %20 : vector<16x64xf32>
    %22 = tpu.concatenate %21, %18 in 1 : vector<16x64xf32>, vector<16x64xf32> -> vector<16x128xf32>
    %c1 = arith.constant 1 : index
    %c0_15 = arith.constant 0 : index
    %c0_16 = arith.constant 0 : index
    %23 = vector.load %arg5[%c1, %c0_15, %c0_16] : memref<4x128x64xf32, #tpu.memory_space<vmem>>, vector<1x128x64xf32>
    %24 = vector.shape_cast %23 : vector<1x128x64xf32> to vector<128x64xf32>
    %cst_17 = arith.constant dense<0.000000e+00> : vector<16x64xf32>
    %25 = tpu.matmul %22, %24, %cst_17 {dimension_numbers = #tpu.dot_dimension_numbers<[1], [0], [0], [1], [0, 0, 1, 1], [], []>} : vector<16x128xf32>, vector<128x64xf32>, vector<16x64xf32> -> vector<16x64xf32>
    %c1_18 = arith.constant 1 : index
    %c0_19 = arith.constant 0 : index
    %c0_20 = arith.constant 0 : index
    %26 = vector.load %arg6[%c1_18, %c0_19, %c0_20] : memref<4x1x64xf32, #tpu.memory_space<vmem>>, vector<1x1x64xf32>
    %27 = vector.shape_cast %26 : vector<1x1x64xf32> to vector<1x64xf32>
    %28 = vector.broadcast %27 : vector<1x64xf32> to vector<16x64xf32>
    %29 = arith.addf %25, %28 : vector<16x64xf32>
    %cst_21 = arith.constant 0.000000e+00 : f32
    %30 = vector.broadcast %cst_21 : f32 to vector<16x64xf32>
    %31 = arith.maximumf %29, %30 : vector<16x64xf32>
    %c1_i32_22 = arith.constant 1 : i32
    %32 = tpu.dynamic_rotate %31 by %c1_i32_22 dim 0 : vector<16x64xf32>, i32 -> vector<16x64xf32>
    %33 = vector.broadcast %5 : vector<16x1xf32> to vector<16x64xf32>
    %34 = arith.mulf %32, %33 : vector<16x64xf32>
    %35 = tpu.concatenate %34, %31 in 1 : vector<16x64xf32>, vector<16x64xf32> -> vector<16x128xf32>
    %c2 = arith.constant 2 : index
    %c0_23 = arith.constant 0 : index
    %c0_24 = arith.constant 0 : index
    %36 = vector.load %arg5[%c2, %c0_23, %c0_24] : memref<4x128x64xf32, #tpu.memory_space<vmem>>, vector<1x128x64xf32>
    %37 = vector.shape_cast %36 : vector<1x128x64xf32> to vector<128x64xf32>
    %cst_25 = arith.constant dense<0.000000e+00> : vector<16x64xf32>
    %38 = tpu.matmul %35, %37, %cst_25 {dimension_numbers = #tpu.dot_dimension_numbers<[1], [0], [0], [1], [0, 0, 1, 1], [], []>} : vector<16x128xf32>, vector<128x64xf32>, vector<16x64xf32> -> vector<16x64xf32>
    %c2_26 = arith.constant 2 : index
    %c0_27 = arith.constant 0 : index
    %c0_28 = arith.constant 0 : index
    %39 = vector.load %arg6[%c2_26, %c0_27, %c0_28] : memref<4x1x64xf32, #tpu.memory_space<vmem>>, vector<1x1x64xf32>
    %40 = vector.shape_cast %39 : vector<1x1x64xf32> to vector<1x64xf32>
    %41 = vector.broadcast %40 : vector<1x64xf32> to vector<16x64xf32>
    %42 = arith.addf %38, %41 : vector<16x64xf32>
    %cst_29 = arith.constant 0.000000e+00 : f32
    %43 = vector.broadcast %cst_29 : f32 to vector<16x64xf32>
    %44 = arith.maximumf %42, %43 : vector<16x64xf32>
    %c1_i32_30 = arith.constant 1 : i32
    %45 = tpu.dynamic_rotate %44 by %c1_i32_30 dim 0 : vector<16x64xf32>, i32 -> vector<16x64xf32>
    %46 = vector.broadcast %5 : vector<16x1xf32> to vector<16x64xf32>
    %47 = arith.mulf %45, %46 : vector<16x64xf32>
    %48 = tpu.concatenate %47, %44 in 1 : vector<16x64xf32>, vector<16x64xf32> -> vector<16x128xf32>
    %c3 = arith.constant 3 : index
    %c0_31 = arith.constant 0 : index
    %c0_32 = arith.constant 0 : index
    %49 = vector.load %arg5[%c3, %c0_31, %c0_32] : memref<4x128x64xf32, #tpu.memory_space<vmem>>, vector<1x128x64xf32>
    %50 = vector.shape_cast %49 : vector<1x128x64xf32> to vector<128x64xf32>
    %cst_33 = arith.constant dense<0.000000e+00> : vector<16x64xf32>
    %51 = tpu.matmul %48, %50, %cst_33 {dimension_numbers = #tpu.dot_dimension_numbers<[1], [0], [0], [1], [0, 0, 1, 1], [], []>} : vector<16x128xf32>, vector<128x64xf32>, vector<16x64xf32> -> vector<16x64xf32>
    %c3_34 = arith.constant 3 : index
    %c0_35 = arith.constant 0 : index
    %c0_36 = arith.constant 0 : index
    %52 = vector.load %arg6[%c3_34, %c0_35, %c0_36] : memref<4x1x64xf32, #tpu.memory_space<vmem>>, vector<1x1x64xf32>
    %53 = vector.shape_cast %52 : vector<1x1x64xf32> to vector<1x64xf32>
    %54 = vector.broadcast %53 : vector<1x64xf32> to vector<16x64xf32>
    %55 = arith.addf %51, %54 : vector<16x64xf32>
    %cst_37 = arith.constant 0.000000e+00 : f32
    %56 = vector.broadcast %cst_37 : f32 to vector<16x64xf32>
    %57 = arith.maximumf %55, %56 : vector<16x64xf32>
    %58 = vector.extract_strided_slice %57 {offsets = [8, 0], sizes = [8, 64], strides = [1, 1]} : vector<16x64xf32> to vector<8x64xf32>
    %c0_38 = arith.constant 0 : index
    %c0_39 = arith.constant 0 : index
    %59 = vector.load %arg7[%c0_38, %c0_39] : memref<64x128xf32, #tpu.memory_space<vmem>>, vector<64x128xf32>
    %cst_40 = arith.constant dense<0.000000e+00> : vector<8x128xf32>
    %60 = tpu.matmul %58, %59, %cst_40 {dimension_numbers = #tpu.dot_dimension_numbers<[1], [0], [0], [1], [0, 0, 1, 1], [], []>} : vector<8x64xf32>, vector<64x128xf32>, vector<8x128xf32> -> vector<8x128xf32>
    %c0_41 = arith.constant 0 : index
    %c0_42 = arith.constant 0 : index
    %61 = vector.load %arg8[%c0_41, %c0_42] : memref<1x128xf32, #tpu.memory_space<vmem>>, vector<1x128xf32>
    %62 = vector.broadcast %61 : vector<1x128xf32> to vector<8x128xf32>
    %63 = arith.addf %60, %62 : vector<8x128xf32>
    %c0_43 = arith.constant 0 : index
    %c0_44 = arith.constant 0 : index
    %64 = vector.load %arg9[%c0_43, %c0_44] : memref<8x128xf32, #tpu.memory_space<vmem>>, vector<8x128xf32>
    tpu.vector_store %arg9[%c0_43, %c0_44], %63 {strides = array<i32>} : memref<8x128xf32, #tpu.memory_space<vmem>>, vector<8x128xf32>,
    return
  }
  func.func @transform_0(%arg0: i32) -> (i32, i32) {
    %c1_i32 = arith.constant 1 : i32
    %0 = arith.subi %arg0, %c1_i32 : i32
    %c0_i32 = arith.constant 0 : i32
    %1 = arith.maxsi %0, %c0_i32 : i32
    %c0_i32_0 = arith.constant 0 : i32
    %c0_i32_1 = arith.constant 0 : i32
    return %1, %c0_i32_0 : i32, i32
  }
  func.func @transform_1(%arg0: i32) -> (i32, i32) {
    %c0_i32 = arith.constant 0 : i32
    %c0_i32_0 = arith.constant 0 : i32
    return %arg0, %c0_i32 : i32, i32
  }
  func.func @transform_2(%arg0: i32) -> (i32, i32) {
    %c1_i32 = arith.constant 1 : i32
    %0 = arith.subi %arg0, %c1_i32 : i32
    %c0_i32 = arith.constant 0 : i32
    %1 = arith.maxsi %0, %c0_i32 : i32
    %c0_i32_0 = arith.constant 0 : i32
    %c0_i32_1 = arith.constant 0 : i32
    return %1, %c0_i32_0 : i32, i32
  }
  func.func @transform_3(%arg0: i32) -> (i32, i32) {
    %c0_i32 = arith.constant 0 : i32
    %c0_i32_0 = arith.constant 0 : i32
    return %arg0, %c0_i32 : i32, i32
  }
  func.func @transform_4(%arg0: i32) -> (i32, i32, i32) {
    %c0_i32 = arith.constant 0 : i32
    %c0_i32_0 = arith.constant 0 : i32
    %c0_i32_1 = arith.constant 0 : i32
    %c0_i32_2 = arith.constant 0 : i32
    return %c0_i32, %c0_i32_0, %c0_i32_1 : i32, i32, i32
  }
  func.func @transform_5(%arg0: i32) -> (i32, i32, i32) {
    %c0_i32 = arith.constant 0 : i32
    %c0_i32_0 = arith.constant 0 : i32
    %c0_i32_1 = arith.constant 0 : i32
    %c0_i32_2 = arith.constant 0 : i32
    return %c0_i32, %c0_i32_0, %c0_i32_1 : i32, i32, i32
  }
  func.func @transform_6(%arg0: i32) -> (i32, i32) {
    %c0_i32 = arith.constant 0 : i32
    %c0_i32_0 = arith.constant 0 : i32
    %c0_i32_1 = arith.constant 0 : i32
    return %c0_i32, %c0_i32_0 : i32, i32
  }
  func.func @transform_7(%arg0: i32) -> (i32, i32) {
    %c0_i32 = arith.constant 0 : i32
    %c0_i32_0 = arith.constant 0 : i32
    %c0_i32_1 = arith.constant 0 : i32
    return %c0_i32, %c0_i32_0 : i32, i32
  }
  func.func @transform_8(%arg0: i32) -> (i32, i32) {
    %c0_i32 = arith.constant 0 : i32
    %c0_i32_0 = arith.constant 0 : i32
    return %arg0, %c0_i32 : i32, i32
  }
}

</mosaic_0001>

<llo_original>
// kernel: tpu_custom_call.1
$region0: #{tpu_custom_call.1}
  #allocation0 [shape = 'u32[]', space=smem, size = 0x4, offset = 0x4, fixed_abs, tag = 'smem constant byte address 0x4 - core index']
  #allocation1 [shape = 'u32[144,128]{1,0:T(1,128)}', space=vmem, size = 0x12000, scoped, tag = 'internal scratch']
  %s0 = inlined_call_operand.vmem [shape: f32[8,64], index: 0, kind: input, shape index: {}]
  %s1 = inlined_call_operand.vmem [shape: f32[8,64], index: 1, kind: input, shape index: {}]
  %s2 = inlined_call_operand.vmem [shape: f32[8,1], index: 2, kind: input, shape index: {}]
  %s3 = inlined_call_operand.vmem [shape: f32[8,1], index: 3, kind: input, shape index: {}]
  %s4 = inlined_call_operand.vmem [shape: f32[4,128,64], index: 4, kind: input, shape index: {}]
  %s5 = inlined_call_operand.vmem [shape: f32[4,1,64], index: 5, kind: input, shape index: {}]
  %s6 = inlined_call_operand.vmem [shape: f32[64,128], index: 6, kind: input, shape index: {}]
  %s7 = inlined_call_operand.vmem [shape: f32[1,128], index: 7, kind: input, shape index: {}]
  %s8 = inlined_call_operand.hbm [shape: f32[8,128], index: 8, kind: output, shape index: {}]
  %s9 = sld [smem:[#allocation0]]
  $region42: #{tpu_custom_call.1} parent=0
    _
  %s11 = ssub.s32 1, %s9
  %s12 = scalar_select 0, %s11, %s9
  $region1: #{tpu_custom_call.1} parent=0
    #allocation2 [shape = 'u8[4096]{0}', space=vmem, size = 0x1000, scoped, tag = 'output window, operand 0, single buffered']
    #allocation3 [shape = 's32[1]{0}', space=sflag, size = 0x4, scoped, tag = 'scoped memory for tpu_custom_call.1']
    %13 = vsyncpa [#allocation3], 0
    // Predicated region
    $region2: #{tpu_custom_call.1} parent=1 // pred_check
      _
    $region3: #{tpu_custom_call.1} parent=1 // pred_check_branch
      %15 = sbr.rel (0) target = $region5
    $region4: #{tpu_custom_call.1} parent=1 // pred_region
      %s16 = ssub.s32 0, 1
      %p17 = scmp.gt.s32.totalorder %s16, 0
      %s18 = scalar_select %p17, %s16, 0
      %p19 = scmp.lt.s32.totalorder %s18, 0
      %s20 = scalar_select %p19, %s18, 0
      %s21 = smul.addr %s20, 8
      %s22 = scalar_lea.vmem %s0, %s21
      %s23 = ssub.s32 0, 1
      %p24 = scmp.gt.s32.totalorder %s23, 0
      %s25 = scalar_select %p24, %s23, 0
    $region5: #{tpu_custom_call.1} parent=1 // pred_fallthru
      _
    // Predicated region
    $region6: #{tpu_custom_call.1} parent=1 // pred_check
      _
    $region7: #{tpu_custom_call.1} parent=1 // pred_check_branch
      %27 = sbr.rel (0) target = $region9
    $region8: #{tpu_custom_call.1} parent=1 // pred_region
      _
    $region9: #{tpu_custom_call.1} parent=1 // pred_fallthru
      _
    // Predicated region
    $region10: #{tpu_custom_call.1} parent=1 // pred_check
      _
    $region11: #{tpu_custom_call.1} parent=1 // pred_check_branch
      %29 = sbr.rel (0) target = $region13
    $region12: #{tpu_custom_call.1} parent=1 // pred_region
      %s30 = ssub.s32 0, 1
      %p31 = scmp.gt.s32.totalorder %s30, 0
      %s32 = scalar_select %p31, %s30, 0
      %p33 = scmp.lt.s32.totalorder %s32, 0
      %s34 = scalar_select %p33, %s32, 0
      %s35 = smul.addr %s34, 8
      %s36 = scalar_lea.vmem %s2, %s35
      %s37 = ssub.s32 0, 1
      %p38 = scmp.gt.s32.totalorder %s37, 0
      %s39 = scalar_select %p38, %s37, 0
    $region13: #{tpu_custom_call.1} parent=1 // pred_fallthru
      _
    // Predicated region
    $region14: #{tpu_custom_call.1} parent=1 // pred_check
      _
    $region15: #{tpu_custom_call.1} parent=1 // pred_check_branch
      %41 = sbr.rel (0) target = $region17
    $region16: #{tpu_custom_call.1} parent=1 // pred_region
      _
    $region17: #{tpu_custom_call.1} parent=1 // pred_fallthru
      _
    // Predicated region
    $region18: #{tpu_custom_call.1} parent=1 // pred_check
      _
    $region19: #{tpu_custom_call.1} parent=1 // pred_check_branch
      %43 = sbr.rel (0) target = $region21
    $region20: #{tpu_custom_call.1} parent=1 // pred_region
      _
    $region21: #{tpu_custom_call.1} parent=1 // pred_fallthru
      _
    // Predicated region
    $region22: #{tpu_custom_call.1} parent=1 // pred_check
      _
    $region23: #{tpu_custom_call.1} parent=1 // pred_check_branch
      %45 = sbr.rel (0) target = $region25
    $region24: #{tpu_custom_call.1} parent=1 // pred_region
      _
    $region25: #{tpu_custom_call.1} parent=1 // pred_fallthru
      _
    // Predicated region
    $region26: #{tpu_custom_call.1} parent=1 // pred_check
      _
    $region27: #{tpu_custom_call.1} parent=1 // pred_check_branch
      %47 = sbr.rel (0) target = $region29
    $region28: #{tpu_custom_call.1} parent=1 // pred_region
      _
    $region29: #{tpu_custom_call.1} parent=1 // pred_fallthru
      _
    // Predicated region
    $region30: #{tpu_custom_call.1} parent=1 // pred_check
      _
    $region31: #{tpu_custom_call.1} parent=1 // pred_check_branch
      %49 = sbr.rel (0) target = $region33
    $region32: #{tpu_custom_call.1} parent=1 // pred_region
      _
    $region33: #{tpu_custom_call.1} parent=1 // pred_fallthru
      _
    %s50 = ssub.s32 0, 1
    %p51 = scmp.gt.s32.totalorder %s50, 0
    %s52 = scalar_select %p51, %s50, 0
    %p53 = scmp.lt.s32.totalorder %s52, 0
    %s54 = scalar_select %p53, %s52, 0
    %s55 = smul.addr %s54, 8
    %s56 = scalar_lea.vmem %s0, %s55
    %s57 = ssub.s32 0, 1
    %p58 = scmp.gt.s32.totalorder %s57, 0
    %s59 = scalar_select %p58, %s57, 0
    %p60 = scmp.lt.s32.totalorder %s59, 0
    %s61 = scalar_select %p60, %s59, 0
    %s62 = smul.addr %s61, 8
    %s63 = scalar_lea.vmem %s2, %s62
    %s64 = ssub.s32 0, 1
    %p65 = scmp.gt.s32.totalorder %s64, 0
    %s66 = scalar_select %p65, %s64, 0
    %p67 = scmp.lt.s32.totalorder %s66, 0
    %s68 = scalar_select %p67, %s66, 0
    %s69 = smul.addr %s68, 8
    %s70 = scalar_lea.vmem %s0, %s69
    %s71 = ssub.s32 0, 1
    %p72 = scmp.gt.s32.totalorder %s71, 0
    %s73 = scalar_select %p72, %s71, 0
    %s74 = ssub.s32 0, 1
    %p75 = scmp.gt.s32.totalorder %s74, 0
    %s76 = scalar_select %p75, %s74, 0
    %p77 = scmp.lt.s32.totalorder %s76, 0
    %s78 = scalar_select %p77, %s76, 0
    %s79 = smul.addr %s78, 8
    %s80 = scalar_lea.vmem %s2, %s79
    %s81 = ssub.s32 0, 1
    %p82 = scmp.gt.s32.totalorder %s81, 0
    %s83 = scalar_select %p82, %s81, 0
    %v84 = vld [vmem:[%s70] sm:$0xff]
    %v85 = vld [vmem:[%s1] sm:$0xff]
    %v86 = vld [vmem:[%s80] sm:$0xff]
    %v87 = vld [vmem:[%s3] sm:$0xff]
    %v88 = vrot.slane %v84, 7
    %v89 = vrot.slane %v85, 7
    %v90 = vlaneseq
    %v91 = vshrl.u32 %v90, 7
    %vm92 = vcmp.lt.s32.totalorder %v91, 1
    %v93 = vsel %vm92, %v88, %v89
    %v94 = vsel %vm92, %v89, %v88
    %96 = vset.pattern.permute.xlu0 0
    %97 = vperm.xlu0 %96, %v86
    %v98 = vpop.permute.xlu0 %97
    %101 = vset.pattern.permute.xlu0 0
    %102 = vperm.xlu0 %101, %v87
    %v103 = vpop.permute.xlu0 %102
    %v105 = vmul.f32 %v94, %v98
    %v106 = vmul.f32 %v93, %v103
    %109 = vrot.lane.b32.xlu0 %v84, 64
    %v110 = vpop.permute.xlu0 %109
    %111 = vrot.lane.b32.xlu0 %v85, 64
    %v112 = vpop.permute.xlu0 %111
    %vm115 = vcmask 523264
    %v116 = vsel %vm115, %v105, %v110
    %v117 = vsel %vm115, %v106, %v112
    %v118 = vld [vmem:[%s4] sm:$0xff]
    %v119 = vld [vmem:[%s4 + $0x8] sm:$0xff]
    %v120 = vld [vmem:[%s4 + $0x10] sm:$0xff]
    %v121 = vld [vmem:[%s4 + $0x18] sm:$0xff]
    %v122 = vld [vmem:[%s4 + $0x20] sm:$0xff]
    %v123 = vld [vmem:[%s4 + $0x28] sm:$0xff]
    %v124 = vld [vmem:[%s4 + $0x30] sm:$0xff]
    %v125 = vld [vmem:[%s4 + $0x38] sm:$0xff]
    %v126 = vld [vmem:[%s4 + $0x40] sm:$0xff]
    %v127 = vld [vmem:[%s4 + $0x48] sm:$0xff]
    %v128 = vld [vmem:[%s4 + $0x50] sm:$0xff]
    %v129 = vld [vmem:[%s4 + $0x58] sm:$0xff]
    %v130 = vld [vmem:[%s4 + $0x60] sm:$0xff]
    %v131 = vld [vmem:[%s4 + $0x68] sm:$0xff]
    %v132 = vld [vmem:[%s4 + $0x70] sm:$0xff]
    %v133 = vld [vmem:[%s4 + $0x78] sm:$0xff]
    %v134 = vld [vmem:[%s5] sm:$0x1]
    %v136 = vlaneseq
    %v137 = vshrl.u32 %v136, 7
    %v138 = vsub.s32 0, %v137
    %v139 = vrot.slane %v134, %v138
    %141 = vmatprep.subr.mxu0 0.0
    %142 = vmatpush1.msra.mxu0 %v133
    %143 = vmatprep.subr.mxu0 0.0
    %144 = vmatpush1.msra.mxu0 %v132
    %145 = vmatprep.subr.mxu0 0.0
    %146 = vmatpush1.msra.mxu0 %v131
    %147 = vmatprep.subr.mxu0 0.0
    %148 = vmatpush1.msra.mxu0 %v130
    %149 = vmatprep.subr.mxu0 0.0
    %150 = vmatpush1.msra.mxu0 %v129
    %151 = vmatprep.subr.mxu0 0.0
    %152 = vmatpush1.msra.mxu0 %v128
    %153 = vmatprep.subr.mxu0 0.0
    %154 = vmatpush1.msra.mxu0 %v127
    %155 = vmatprep.subr.mxu0 0.0
    %156 = vmatpush1.msra.mxu0 %v126
    %157 = vmatprep.subr.mxu0 0.0
    %158 = vmatpush1.msra.mxu0 %v125
    %159 = vmatprep.subr.mxu0 0.0
    %160 = vmatpush1.msra.mxu0 %v124
    %161 = vmatprep.subr.mxu0 0.0
    %162 = vmatpush1.msra.mxu0 %v123
    %163 = vmatprep.subr.mxu0 0.0
    %164 = vmatpush1.msra.mxu0 %v122
    %165 = vmatprep.subr.mxu0 0.0
    %166 = vmatpush1.msra.mxu0 %v121
    %167 = vmatprep.subr.mxu0 0.0
    %168 = vmatpush1.msra.mxu0 %v120
    %169 = vmatprep.subr.mxu0 0.0
    %170 = vmatpush1.msra.mxu0 %v119
    %171 = vmatprep.subr.mxu0 0.0
    %172 = vmatpush1.msra.mxu0 %v118
    %173 = vmatprep.subr.mxu0 0.0
    %174 = vmatpush2.msra.mxu0 0.0
    %175 = vmatprep.subr.mxu0 0.0
    %176 = vmatpush2.msra.mxu0 0.0
    %177 = vmatprep.subr.mxu0 0.0
    %178 = vmatpush2.msra.mxu0 0.0
    %179 = vmatprep.subr.mxu0 0.0
    %180 = vmatpush2.msra.mxu0 0.0
    %181 = vmatprep.subr.mxu0 0.0
    %182 = vmatpush2.msra.mxu0 0.0
    %183 = vmatprep.subr.mxu0 0.0
    %184 = vmatpush2.msra.mxu0 0.0
    %185 = vmatprep.subr.mxu0 0.0
    %186 = vmatpush2.msra.mxu0 0.0
    %187 = vmatprep.subr.mxu0 0.0
    %188 = vmatpush2.msra.mxu0 0.0
    %189 = vmatprep.subr.mxu0 0.0
    %190 = vmatpush2.msra.mxu0 0.0
    %191 = vmatprep.subr.mxu0 0.0
    %192 = vmatpush2.msra.mxu0 0.0
    %193 = vmatprep.subr.mxu0 0.0
    %194 = vmatpush2.msra.mxu0 0.0
    %195 = vmatprep.subr.mxu0 0.0
    %196 = vmatpush2.msra.mxu0 0.0
    %197 = vmatprep.subr.mxu0 0.0
    %198 = vmatpush2.msra.mxu0 0.0
    %199 = vmatprep.subr.mxu0 0.0
    %200 = vmatpush2.msra.mxu0 0.0
    %201 = vmatprep.subr.mxu0 0.0
    %202 = vmatpush2.msra.mxu0 0.0
    %203 = vmatprep.subr.mxu0 0.0
    %204 = vmatpush2.msra.mxu0 0.0
    %205 = vmatprep.mubr.f32.mxu0 0.0
    %206 = vmatmul.mubr.f32.gmra.mxu0 %v116
    %v207 = vpop.f32.mrf.mxu0
    %v208 = vadd.f32 %v139, %v207
    %v209 = vpop.f32.mrf.mxu0
    %210 = vmatprep.mubr.f32.mxu0 0.0
    %211 = vmatmul.mubr.f32.gmra.mxu0 %v117
    %v212 = vpop.f32.mrf.mxu0
    %v213 = vadd.f32 %v139, %v212
    %v214 = vpop.f32.mrf.mxu0
    %215 = vdwg.mxu0
    %v216 = vmax.f32 %v208, 0.0
    %v217 = vmax.f32 %v213, 0.0
    %v218 = vrot.slane %v216, 7
    %v219 = vrot.slane %v217, 7
    %v220 = vsel %vm92, %v218, %v219
    %v221 = vsel %vm92, %v219, %v218
    %v222 = vmul.f32 %v221, %v98
    %v223 = vmul.f32 %v220, %v103
    %226 = vrot.lane.b32.xlu0 %v216, 64
    %v227 = vpop.permute.xlu0 %226
    %228 = vrot.lane.b32.xlu0 %v217, 64
    %v229 = vpop.permute.xlu0 %228
    %v232 = vsel %vm115, %v222, %v227
    %v233 = vsel %vm115, %v223, %v229
    %s234 = scalar_lea.vmem %s4, 128
    %v235 = vld [vmem:[%s234] sm:$0xff]
    %v236 = vld [vmem:[%s234 + $0x8] sm:$0xff]
    %v237 = vld [vmem:[%s234 + $0x10] sm:$0xff]
    %v238 = vld [vmem:[%s234 + $0x18] sm:$0xff]
    %v239 = vld [vmem:[%s234 + $0x20] sm:$0xff]
    %v240 = vld [vmem:[%s234 + $0x28] sm:$0xff]
    %v241 = vld [vmem:[%s234 + $0x30] sm:$0xff]
    %v242 = vld [vmem:[%s234 + $0x38] sm:$0xff]
    %v243 = vld [vmem:[%s234 + $0x40] sm:$0xff]
    %v244 = vld [vmem:[%s234 + $0x48] sm:$0xff]
    %v245 = vld [vmem:[%s234 + $0x50] sm:$0xff]
    %v246 = vld [vmem:[%s234 + $0x58] sm:$0xff]
    %v247 = vld [vmem:[%s234 + $0x60] sm:$0xff]
    %v248 = vld [vmem:[%s234 + $0x68] sm:$0xff]
    %v249 = vld [vmem:[%s234 + $0x70] sm:$0xff]
    %v250 = vld [vmem:[%s234 + $0x78] sm:$0xff]
    %s251 = scalar_lea.vmem %s5, 1
    %v252 = vld [vmem:[%s251] sm:$0x1]
    %v254 = vlaneseq
    %v255 = vshrl.u32 %v254, 7
    %v256 = vsub.s32 0, %v255
    %v257 = vrot.slane %v252, %v256
    %259 = vmatprep.subr.mxu0 0.0
    %260 = vmatpush1.msra.mxu0 %v250
    %261 = vmatprep.subr.mxu0 0.0
    %262 = vmatpush1.msra.mxu0 %v249
    %263 = vmatprep.subr.mxu0 0.0
    %264 = vmatpush1.msra.mxu0 %v248
    %265 = vmatprep.subr.mxu0 0.0
    %266 = vmatpush1.msra.mxu0 %v247
    %267 = vmatprep.subr.mxu0 0.0
    %268 = vmatpush1.msra.mxu0 %v246
    %269 = vmatprep.subr.mxu0 0.0
    %270 = vmatpush1.msra.mxu0 %v245
    %271 = vmatprep.subr.mxu0 0.0
    %272 = vmatpush1.msra.mxu0 %v244
    %273 = vmatprep.subr.mxu0 0.0
    %274 = vmatpush1.msra.mxu0 %v243
    %275 = vmatprep.subr.mxu0 0.0
    %276 = vmatpush1.msra.mxu0 %v242
    %277 = vmatprep.subr.mxu0 0.0
    %278 = vmatpush1.msra.mxu0 %v241
    %279 = vmatprep.subr.mxu0 0.0
    %280 = vmatpush1.msra.mxu0 %v240
    %281 = vmatprep.subr.mxu0 0.0
    %282 = vmatpush1.msra.mxu0 %v239
    %283 = vmatprep.subr.mxu0 0.0
    %284 = vmatpush1.msra.mxu0 %v238
    %285 = vmatprep.subr.mxu0 0.0
    %286 = vmatpush1.msra.mxu0 %v237
    %287 = vmatprep.subr.mxu0 0.0
    %288 = vmatpush1.msra.mxu0 %v236
    %289 = vmatprep.subr.mxu0 0.0
    %290 = vmatpush1.msra.mxu0 %v235
    %291 = vmatprep.subr.mxu0 0.0
    %292 = vmatpush2.msra.mxu0 0.0
    %293 = vmatprep.subr.mxu0 0.0
    %294 = vmatpush2.msra.mxu0 0.0
    %295 = vmatprep.subr.mxu0 0.0
    %296 = vmatpush2.msra.mxu0 0.0
    %297 = vmatprep.subr.mxu0 0.0
    %298 = vmatpush2.msra.mxu0 0.0
    %299 = vmatprep.subr.mxu0 0.0
    %300 = vmatpush2.msra.mxu0 0.0
    %301 = vmatprep.subr.mxu0 0.0
    %302 = vmatpush2.msra.mxu0 0.0
    %303 = vmatprep.subr.mxu0 0.0
    %304 = vmatpush2.msra.mxu0 0.0
    %305 = vmatprep.subr.mxu0 0.0
    %306 = vmatpush2.msra.mxu0 0.0
    %307 = vmatprep.subr.mxu0 0.0
    %308 = vmatpush2.msra.mxu0 0.0
    %309 = vmatprep.subr.mxu0 0.0
    %310 = vmatpush2.msra.mxu0 0.0
    %311 = vmatprep.subr.mxu0 0.0
    %312 = vmatpush2.msra.mxu0 0.0
    %313 = vmatprep.subr.mxu0 0.0
    %314 = vmatpush2.msra.mxu0 0.0
    %315 = vmatprep.subr.mxu0 0.0
    %316 = vmatpush2.msra.mxu0 0.0
    %317 = vmatprep.subr.mxu0 0.0
    %318 = vmatpush2.msra.mxu0 0.0
    %319 = vmatprep.subr.mxu0 0.0
    %320 = vmatpush2.msra.mxu0 0.0
    %321 = vmatprep.subr.mxu0 0.0
    %322 = vmatpush2.msra.mxu0 0.0
    %323 = vmatprep.mubr.f32.mxu0 0.0
    %324 = vmatmul.mubr.f32.gmra.mxu0 %v232
    %v325 = vpop.f32.mrf.mxu0
    %v326 = vadd.f32 %v257, %v325
    %v327 = vpop.f32.mrf.mxu0
    %328 = vmatprep.mubr.f32.mxu0 0.0
    %329 = vmatmul.mubr.f32.gmra.mxu0 %v233
    %v330 = vpop.f32.mrf.mxu0
    %v331 = vadd.f32 %v257, %v330
    %v332 = vpop.f32.mrf.mxu0
    %333 = vdwg.mxu0
    %v334 = vmax.f32 %v326, 0.0
    %v335 = vmax.f32 %v331, 0.0
    %v336 = vrot.slane %v334, 7
    %v337 = vrot.slane %v335, 7
    %v338 = vsel %vm92, %v336, %v337
    %v339 = vsel %vm92, %v337, %v336
    %v340 = vmul.f32 %v339, %v98
    %v341 = vmul.f32 %v338, %v103
    %344 = vrot.lane.b32.xlu0 %v334, 64
    %v345 = vpop.permute.xlu0 %344
    %346 = vrot.lane.b32.xlu0 %v335, 64
    %v347 = vpop.permute.xlu0 %346
    %v350 = vsel %vm115, %v340, %v345
    %v351 = vsel %vm115, %v341, %v347
    %s352 = scalar_lea.vmem %s4, 256
    %v353 = vld [vmem:[%s352] sm:$0xff]
    %v354 = vld [vmem:[%s352 + $0x8] sm:$0xff]
    %v355 = vld [vmem:[%s352 + $0x10] sm:$0xff]
    %v356 = vld [vmem:[%s352 + $0x18] sm:$0xff]
    %v357 = vld [vmem:[%s352 + $0x20] sm:$0xff]
    %v358 = vld [vmem:[%s352 + $0x28] sm:$0xff]
    %v359 = vld [vmem:[%s352 + $0x30] sm:$0xff]
    %v360 = vld [vmem:[%s352 + $0x38] sm:$0xff]
    %v361 = vld [vmem:[%s352 + $0x40] sm:$0xff]
    %v362 = vld [vmem:[%s352 + $0x48] sm:$0xff]
    %v363 = vld [vmem:[%s352 + $0x50] sm:$0xff]
    %v364 = vld [vmem:[%s352 + $0x58] sm:$0xff]
    %v365 = vld [vmem:[%s352 + $0x60] sm:$0xff]
    %v366 = vld [vmem:[%s352 + $0x68] sm:$0xff]
    %v367 = vld [vmem:[%s352 + $0x70] sm:$0xff]
    %v368 = vld [vmem:[%s352 + $0x78] sm:$0xff]
    %s369 = scalar_lea.vmem %s5, 2
    %v370 = vld [vmem:[%s369] sm:$0x1]
    %v372 = vlaneseq
    %v373 = vshrl.u32 %v372, 7
    %v374 = vsub.s32 0, %v373
    %v375 = vrot.slane %v370, %v374
    %377 = vmatprep.subr.mxu0 0.0
    %378 = vmatpush1.msra.mxu0 %v368
    %379 = vmatprep.subr.mxu0 0.0
    %380 = vmatpush1.msra.mxu0 %v367
    %381 = vmatprep.subr.mxu0 0.0
    %382 = vmatpush1.msra.mxu0 %v366
    %383 = vmatprep.subr.mxu0 0.0
    %384 = vmatpush1.msra.mxu0 %v365
    %385 = vmatprep.subr.mxu0 0.0
    %386 = vmatpush1.msra.mxu0 %v364
    %387 = vmatprep.subr.mxu0 0.0
    %388 = vmatpush1.msra.mxu0 %v363
    %389 = vmatprep.subr.mxu0 0.0
    %390 = vmatpush1.msra.mxu0 %v362
    %391 = vmatprep.subr.mxu0 0.0
    %392 = vmatpush1.msra.mxu0 %v361
    %393 = vmatprep.subr.mxu0 0.0
    %394 = vmatpush1.msra.mxu0 %v360
    %395 = vmatprep.subr.mxu0 0.0
    %396 = vmatpush1.msra.mxu0 %v359
    %397 = vmatprep.subr.mxu0 0.0
    %398 = vmatpush1.msra.mxu0 %v358
    %399 = vmatprep.subr.mxu0 0.0
    %400 = vmatpush1.msra.mxu0 %v357
    %401 = vmatprep.subr.mxu0 0.0
    %402 = vmatpush1.msra.mxu0 %v356
    %403 = vmatprep.subr.mxu0 0.0
    %404 = vmatpush1.msra.mxu0 %v355
    %405 = vmatprep.subr.mxu0 0.0
    %406 = vmatpush1.msra.mxu0 %v354
    %407 = vmatprep.subr.mxu0 0.0
    %408 = vmatpush1.msra.mxu0 %v353
    %409 = vmatprep.subr.mxu0 0.0
    %410 = vmatpush2.msra.mxu0 0.0
    %411 = vmatprep.subr.mxu0 0.0
    %412 = vmatpush2.msra.mxu0 0.0
    %413 = vmatprep.subr.mxu0 0.0
    %414 = vmatpush2.msra.mxu0 0.0
    %415 = vmatprep.subr.mxu0 0.0
    %416 = vmatpush2.msra.mxu0 0.0
    %417 = vmatprep.subr.mxu0 0.0
    %418 = vmatpush2.msra.mxu0 0.0
    %419 = vmatprep.subr.mxu0 0.0
    %420 = vmatpush2.msra.mxu0 0.0
    %421 = vmatprep.subr.mxu0 0.0
    %422 = vmatpush2.msra.mxu0 0.0
    %423 = vmatprep.subr.mxu0 0.0
    %424 = vmatpush2.msra.mxu0 0.0
    %425 = vmatprep.subr.mxu0 0.0
    %426 = vmatpush2.msra.mxu0 0.0
    %427 = vmatprep.subr.mxu0 0.0
    %428 = vmatpush2.msra.mxu0 0.0
    %429 = vmatprep.subr.mxu0 0.0
    %430 = vmatpush2.msra.mxu0 0.0
    %431 = vmatprep.subr.mxu0 0.0
    %432 = vmatpush2.msra.mxu0 0.0
    %433 = vmatprep.subr.mxu0 0.0
    %434 = vmatpush2.msra.mxu0 0.0
    %435 = vmatprep.subr.mxu0 0.0
    %436 = vmatpush2.msra.mxu0 0.0
    %437 = vmatprep.subr.mxu0 0.0
    %438 = vmatpush2.msra.mxu0 0.0
    %439 = vmatprep.subr.mxu0 0.0
    %440 = vmatpush2.msra.mxu0 0.0
    %441 = vmatprep.mubr.f32.mxu0 0.0
    %442 = vmatmul.mubr.f32.gmra.mxu0 %v350
    %v443 = vpop.f32.mrf.mxu0
    %v444 = vadd.f32 %v375, %v443
    %v445 = vpop.f32.mrf.mxu0
    %446 = vmatprep.mubr.f32.mxu0 0.0
    %447 = vmatmul.mubr.f32.gmra.mxu0 %v351
    %v448 = vpop.f32.mrf.mxu0
    %v449 = vadd.f32 %v375, %v448
    %v450 = vpop.f32.mrf.mxu0
    %451 = vdwg.mxu0
    %v452 = vmax.f32 %v444, 0.0
    %v453 = vmax.f32 %v449, 0.0
    %v454 = vrot.slane %v452, 7
    %v455 = vrot.slane %v453, 7
    %v456 = vsel %vm92, %v454, %v455
    %v457 = vsel %vm92, %v455, %v454
    %v458 = vmul.f32 %v457, %v98
    %v459 = vmul.f32 %v456, %v103
    %462 = vrot.lane.b32.xlu0 %v452, 64
    %v463 = vpop.permute.xlu0 %462
    %464 = vrot.lane.b32.xlu0 %v453, 64
    %v465 = vpop.permute.xlu0 %464
    %v468 = vsel %vm115, %v458, %v463
    %v469 = vsel %vm115, %v459, %v465
    %s470 = scalar_lea.vmem %s4, 384
    %v471 = vld [vmem:[%s470] sm:$0xff]
    %v472 = vld [vmem:[%s470 + $0x8] sm:$0xff]
    %v473 = vld [vmem:[%s470 + $0x10] sm:$0xff]
    %v474 = vld [vmem:[%s470 + $0x18] sm:$0xff]
    %v475 = vld [vmem:[%s470 + $0x20] sm:$0xff]
    %v476 = vld [vmem:[%s470 + $0x28] sm:$0xff]
    %v477 = vld [vmem:[%s470 + $0x30] sm:$0xff]
    %v478 = vld [vmem:[%s470 + $0x38] sm:$0xff]
    %v479 = vld [vmem:[%s470 + $0x40] sm:$0xff]
    %v480 = vld [vmem:[%s470 + $0x48] sm:$0xff]
    %v481 = vld [vmem:[%s470 + $0x50] sm:$0xff]
    %v482 = vld [vmem:[%s470 + $0x58] sm:$0xff]
    %v483 = vld [vmem:[%s470 + $0x60] sm:$0xff]
    %v484 = vld [vmem:[%s470 + $0x68] sm:$0xff]
    %v485 = vld [vmem:[%s470 + $0x70] sm:$0xff]
    %v486 = vld [vmem:[%s470 + $0x78] sm:$0xff]
    %s487 = scalar_lea.vmem %s5, 3
    %v488 = vld [vmem:[%s487] sm:$0x1]
    %v490 = vlaneseq
    %v491 = vshrl.u32 %v490, 7
    %v492 = vsub.s32 0, %v491
    %v493 = vrot.slane %v488, %v492
    %495 = vmatprep.subr.mxu0 0.0
    %496 = vmatpush1.msra.mxu0 %v486
    %497 = vmatprep.subr.mxu0 0.0
    %498 = vmatpush1.msra.mxu0 %v485
    %499 = vmatprep.subr.mxu0 0.0
    %500 = vmatpush1.msra.mxu0 %v484
    %501 = vmatprep.subr.mxu0 0.0
    %502 = vmatpush1.msra.mxu0 %v483
    %503 = vmatprep.subr.mxu0 0.0
    %504 = vmatpush1.msra.mxu0 %v482
    %505 = vmatprep.subr.mxu0 0.0
    %506 = vmatpush1.msra.mxu0 %v481
    %507 = vmatprep.subr.mxu0 0.0
    %508 = vmatpush1.msra.mxu0 %v480
    %509 = vmatprep.subr.mxu0 0.0
    %510 = vmatpush1.msra.mxu0 %v479
    %511 = vmatprep.subr.mxu0 0.0
    %512 = vmatpush1.msra.mxu0 %v478
    %513 = vmatprep.subr.mxu0 0.0
    %514 = vmatpush1.msra.mxu0 %v477
    %515 = vmatprep.subr.mxu0 0.0
    %516 = vmatpush1.msra.mxu0 %v476
    %517 = vmatprep.subr.mxu0 0.0
    %518 = vmatpush1.msra.mxu0 %v475
    %519 = vmatprep.subr.mxu0 0.0
    %520 = vmatpush1.msra.mxu0 %v474
    %521 = vmatprep.subr.mxu0 0.0
    %522 = vmatpush1.msra.mxu0 %v473
    %523 = vmatprep.subr.mxu0 0.0
    %524 = vmatpush1.msra.mxu0 %v472
    %525 = vmatprep.subr.mxu0 0.0
    %526 = vmatpush1.msra.mxu0 %v471
    %527 = vmatprep.subr.mxu0 0.0
    %528 = vmatpush2.msra.mxu0 0.0
    %529 = vmatprep.subr.mxu0 0.0
    %530 = vmatpush2.msra.mxu0 0.0
    %531 = vmatprep.subr.mxu0 0.0
    %532 = vmatpush2.msra.mxu0 0.0
    %533 = vmatprep.subr.mxu0 0.0
    %534 = vmatpush2.msra.mxu0 0.0
    %535 = vmatprep.subr.mxu0 0.0
    %536 = vmatpush2.msra.mxu0 0.0
    %537 = vmatprep.subr.mxu0 0.0
    %538 = vmatpush2.msra.mxu0 0.0
    %539 = vmatprep.subr.mxu0 0.0
    %540 = vmatpush2.msra.mxu0 0.0
    %541 = vmatprep.subr.mxu0 0.0
    %542 = vmatpush2.msra.mxu0 0.0
    %543 = vmatprep.subr.mxu0 0.0
    %544 = vmatpush2.msra.mxu0 0.0
    %545 = vmatprep.subr.mxu0 0.0
    %546 = vmatpush2.msra.mxu0 0.0
    %547 = vmatprep.subr.mxu0 0.0
    %548 = vmatpush2.msra.mxu0 0.0
    %549 = vmatprep.subr.mxu0 0.0
    %550 = vmatpush2.msra.mxu0 0.0
    %551 = vmatprep.subr.mxu0 0.0
    %552 = vmatpush2.msra.mxu0 0.0
    %553 = vmatprep.subr.mxu0 0.0
    %554 = vmatpush2.msra.mxu0 0.0
    %555 = vmatprep.subr.mxu0 0.0
    %556 = vmatpush2.msra.mxu0 0.0
    %557 = vmatprep.subr.mxu0 0.0
    %558 = vmatpush2.msra.mxu0 0.0
    %559 = vmatprep.mubr.f32.mxu0 0.0
    %560 = vmatmul.mubr.f32.gmra.mxu0 %v468
    %v561 = vpop.f32.mrf.mxu0
    %v562 = vpop.f32.mrf.mxu0
    %563 = vmatprep.mubr.f32.mxu0 0.0
    %564 = vmatmul.mubr.f32.gmra.mxu0 %v469
    %v565 = vpop.f32.mrf.mxu0
    %v566 = vadd.f32 %v493, %v565
    %v567 = vpop.f32.mrf.mxu0
    %568 = vdwg.mxu0
    %v569 = vmax.f32 %v566, 0.0
    %v570 = vld [vmem:[%s6] sm:$0xff]
    %v571 = vld [vmem:[%s6 + $0x8] sm:$0xff]
    %v572 = vld [vmem:[%s6 + $0x10] sm:$0xff]
    %v573 = vld [vmem:[%s6 + $0x18] sm:$0xff]
    %v574 = vld [vmem:[%s6 + $0x20] sm:$0xff]
    %v575 = vld [vmem:[%s6 + $0x28] sm:$0xff]
    %v576 = vld [vmem:[%s6 + $0x30] sm:$0xff]
    %v577 = vld [vmem:[%s6 + $0x38] sm:$0xff]
    %v578 = vld [vmem:[%s7] sm:$0x1]
    %v580 = vlaneseq
    %v581 = vshrl.u32 %v580, 7
    %v582 = vsub.s32 0, %v581
    %v583 = vrot.slane %v578, %v582
    %v586 = vsel %vm115, %v569, 0
    %588 = vmatprep.subr.mxu0 0.0
    %589 = vmatpush1.msra.mxu0 0.0
    %590 = vmatprep.subr.mxu0 0.0
    %591 = vmatpush1.msra.mxu0 0.0
    %592 = vmatprep.subr.mxu0 0.0
    %593 = vmatpush1.msra.mxu0 0.0
    %594 = vmatprep.subr.mxu0 0.0
    %595 = vmatpush1.msra.mxu0 0.0
    %596 = vmatprep.subr.mxu0 0.0
    %597 = vmatpush1.msra.mxu0 0.0
    %598 = vmatprep.subr.mxu0 0.0
    %599 = vmatpush1.msra.mxu0 0.0
    %600 = vmatprep.subr.mxu0 0.0
    %601 = vmatpush1.msra.mxu0 0.0
    %602 = vmatprep.subr.mxu0 0.0
    %603 = vmatpush1.msra.mxu0 0.0
    %604 = vmatprep.subr.mxu0 0.0
    %605 = vmatpush1.msra.mxu0 %v577
    %606 = vmatprep.subr.mxu0 0.0
    %607 = vmatpush1.msra.mxu0 %v576
    %608 = vmatprep.subr.mxu0 0.0
    %609 = vmatpush1.msra.mxu0 %v575
    %610 = vmatprep.subr.mxu0 0.0
    %611 = vmatpush1.msra.mxu0 %v574
    %612 = vmatprep.subr.mxu0 0.0
    %613 = vmatpush1.msra.mxu0 %v573
    %614 = vmatprep.subr.mxu0 0.0
    %615 = vmatpush1.msra.mxu0 %v572
    %616 = vmatprep.subr.mxu0 0.0
    %617 = vmatpush1.msra.mxu0 %v571
    %618 = vmatprep.subr.mxu0 0.0
    %619 = vmatpush1.msra.mxu0 %v570
    %620 = vmatprep.subr.mxu0 0.0
    %621 = vmatpush2.msra.mxu0 0.0
    %622 = vmatprep.subr.mxu0 0.0
    %623 = vmatpush2.msra.mxu0 0.0
    %624 = vmatprep.subr.mxu0 0.0
    %625 = vmatpush2.msra.mxu0 0.0
    %626 = vmatprep.subr.mxu0 0.0
    %627 = vmatpush2.msra.mxu0 0.0
    %628 = vmatprep.subr.mxu0 0.0
    %629 = vmatpush2.msra.mxu0 0.0
    %630 = vmatprep.subr.mxu0 0.0
    %631 = vmatpush2.msra.mxu0 0.0
    %632 = vmatprep.subr.mxu0 0.0
    %633 = vmatpush2.msra.mxu0 0.0
    %634 = vmatprep.subr.mxu0 0.0
    %635 = vmatpush2.msra.mxu0 0.0
    %636 = vmatprep.subr.mxu0 0.0
    %637 = vmatpush2.msra.mxu0 0.0
    %638 = vmatprep.subr.mxu0 0.0
    %639 = vmatpush2.msra.mxu0 0.0
    %640 = vmatprep.subr.mxu0 0.0
    %641 = vmatpush2.msra.mxu0 0.0
    %642 = vmatprep.subr.mxu0 0.0
    %643 = vmatpush2.msra.mxu0 0.0
    %644 = vmatprep.subr.mxu0 0.0
    %645 = vmatpush2.msra.mxu0 0.0
    %646 = vmatprep.subr.mxu0 0.0
    %647 = vmatpush2.msra.mxu0 0.0
    %648 = vmatprep.subr.mxu0 0.0
    %649 = vmatpush2.msra.mxu0 0.0
    %650 = vmatprep.subr.mxu0 0.0
    %651 = vmatpush2.msra.mxu0 0.0
    %652 = vmatprep.mubr.f32.mxu0 0.0
    %653 = vmatmul.mubr.f32.gmra.mxu0 %v586
    %v654 = vpop.f32.mrf.mxu0
    %v655 = vadd.f32 %v583, %v654
    %v656 = vpop.f32.mrf.mxu0
    %657 = vdwg.mxu0
    %658 = vst [vmem:[#allocation2] sm:$0xff] %v655
    // Predicated region
    $region34: #{tpu_custom_call.1} parent=1 // pred_check
      _
    $region35: #{tpu_custom_call.1} parent=1 // pred_check_branch
      %660 = sbr.rel (0) target = $region37
    $region36: #{tpu_custom_call.1} parent=1 // pred_region
      %s662 = ssub.s32 128, 128
      %663 = vsyncadd [#allocation3], %s662
      %s665 = sshll.u32 [#allocation2], 4
      %s666 = int_to_ptr.vmem [resolvable:$true] %s665
      %668 = dma.vmem_to_hbm [thread:$0]  %s666, 128, %s8, [#allocation3]
    $region37: #{tpu_custom_call.1} parent=1 // pred_fallthru
      _
    // Predicated region
    $region38: #{tpu_custom_call.1} parent=1 // pred_check
      _
    $region39: #{tpu_custom_call.1} parent=1 // pred_check_branch
      %670 = sbr.rel (0) target = $region41
    $region40: #{tpu_custom_call.1} parent=1 // pred_region
      %671 = dma.done [#allocation3], 128
    $region41: #{tpu_custom_call.1} parent=1 // pred_fallthru
      _
    %672 = vsyncpa [#allocation3], 1

</llo_original>
